<compile_context>
chip_gen: v7x
topology: tpu7x:2x2x1
jax: 0.10.0
libtpu: 0.0.40
codegen_flags: <defaults>
</compile_context>

<pallas_src>
import jax
import jax.numpy as jnp
from jax.experimental import pallas as pl
from jax.experimental.pallas import tpu as pltpu


def _round_up(n, m):
    return ((n + m - 1) // m) * m


def _swish_normal_kernel(s_ref, x_ref, o_ref):
    # s_ref: (1,) f32 in SMEM  -- softplus(beta), precomputed in the wrapper
    # x_ref: (Ts, L) in VMEM   -- lane-dense tile of the flattened input
    # o_ref: (Ts, L) in VMEM
    s = s_ref[0]
    x = x_ref[...].astype(jnp.float32)
    z = x * s
    e = jnp.exp(-z)                                      # EUP
    inv = pl.reciprocal(1.1 * (1.0 + e), approx=True)    # EUP; folds the /1.1
    o_ref[...] = (x * inv).astype(o_ref.dtype)


_LANE_CANDIDATES = (512, 256, 128)


def swish_normal_forward(x, beta, *, min_pallas_elems=64 * 1024):
    """x: any-shape float array, beta: (1,) float parameter.
    Returns x * sigmoid(x * softplus(beta)) / 1.1 with x's shape/dtype."""
    orig_shape = x.shape
    orig_dtype = x.dtype
    n = x.size

    # Scalar hoisted out of the kernel (stays traced; beta is a parameter).
    s = jax.nn.softplus(beta.astype(jnp.float32)).reshape((1,))

    if n == 0:
        return x

    if n < min_pallas_elems:
        # Tiny activations: pallas_call launch + layout plumbing dominates;
        # the pure-jnp expression fuses into neighboring XLA ops for free.
        xf = x.astype(jnp.float32)
        return ((xf * jax.nn.sigmoid(xf * s[0])) / 1.1).astype(orig_dtype)

    itemsize = jnp.dtype(orig_dtype).itemsize
    sub = {4: 8, 2: 16, 1: 32}.get(itemsize, 8)   # min sublane tile per dtype

    # Lane width: prefer one that divides n so we skip the pad/slice copies.
    L = next((l for l in _LANE_CANDIDATES if n % l == 0), 512)

    rows = pl.cdiv(n, L)
    padded_n = rows * L

    x_flat = x.reshape(-1)
    if padded_n != n:
        # Slow path (rare): jnp.pad materializes a full copy, but reshape to
        # (rows, L) requires it.  Last row-block stays partial; Pallas masks it.
        x_flat = jnp.pad(x_flat, (0, padded_n - n))
    x2 = x_flat.reshape(rows, L)

    # Tile sizing: ~4 MiB input tiles -> double-buffered in+out = 16 MiB,
    # under the explicit 32 MiB VMEM limit on every generation.
    target_tile_bytes = 4 << 20
    target_ts = max(sub, (target_tile_bytes // (L * itemsize)) // sub * sub)
    if rows >= 2 * sub:
        # Keep >=2 row-tiles so both v7x TensorCores get work.
        target_ts = min(target_ts, _round_up(pl.cdiv(rows, 2), sub))
    Ts = min(target_ts, _round_up(rows, sub))

    grid = (pl.cdiv(rows, Ts),)

    out2 = pl.pallas_call(
        _swish_normal_kernel,
        out_shape=jax.ShapeDtypeStruct((rows, L), orig_dtype),
        grid=grid,
        in_specs=[
            # softplus(beta): tiny scalar, lives in SMEM (full array).
            pl.BlockSpec(memory_space=pltpu.MemorySpace.SMEM),
            # x: one lane-dense (Ts, L) tile per grid step.
            pl.BlockSpec((Ts, L), lambda i: (i, 0)),
        ],
        out_specs=pl.BlockSpec((Ts, L), lambda i: (i, 0)),
        compiler_params=pltpu.CompilerParams(
            dimension_semantics=("parallel",),
            vmem_limit_bytes=32 << 20,
        ),
        cost_estimate=pl.CostEstimate(
            flops=5 * n,                    # a few VPU muls/adds per element
            transcendentals=2 * n,          # exp + approx reciprocal (EUP)
            bytes_accessed=2 * n * itemsize,
        ),
    )(s, x2)

    out_flat = out2.reshape(-1)
    if padded_n != n:
        out_flat = out_flat[:n]
    return out_flat.reshape(orig_shape)


def swish_normal_reference(x, beta):
    s = jax.nn.softplus(beta.astype(jnp.float32))
    xf = x.astype(jnp.float32)
    return ((xf * jax.nn.sigmoid(xf * s)) / 1.1).astype(x.dtype)


if __name__ == "__main__":
    key = jax.random.PRNGKey(0)
    k1, k2, k3 = jax.random.split(key, 3)
    beta = jnp.array([0.5], dtype=jnp.float32)

    # 1) Small NCHW shape implied by the module; force the Pallas path so the
    #    kernel itself is exercised (n = 2048, multiple of 512 -> no pad/slice).
    x1 = jax.random.normal(k1, (2, 4, 16, 16), dtype=jnp.float32)
    o1 = jax.block_until_ready(swish_normal_forward(x1, beta, min_pallas_elems=0))
    r1 = swish_normal_reference(x1, beta)
    assert o1.shape == x1.shape and o1.dtype == x1.dtype
    assert jnp.allclose(o1, r1, atol=5e-3, rtol=5e-3)

    # Same input through the small-input bypass (default threshold): pure jnp.
    o1b = jax.block_until_ready(swish_normal_forward(x1, beta))
    assert jnp.allclose(o1b, r1, atol=1e-5, rtol=1e-5)

    # 2) bf16 path with a 2-tile grid (rows=32, Ts=16) and the explicit
    #    output cast; HBM traffic stays bf16, compute is f32 in-kernel.
    x2 = jax.random.normal(k2, (2, 8, 32, 32), dtype=jnp.bfloat16)
    o2 = jax.block_until_ready(swish_normal_forward(x2, beta, min_pallas_elems=0))
    r2 = swish_normal_reference(x2, beta)
    assert o2.shape == x2.shape and o2.dtype == x2.dtype
    assert jnp.allclose(o2.astype(jnp.float32), r2.astype(jnp.float32),
                        atol=3e-2, rtol=3e-2)

    # 3) Awkward size (no 128-multiple factor): exercises the pad/slice
    #    fallback and the masked partial last row-block.
    x3 = jax.random.normal(k3, (3, 5, 7, 11), dtype=jnp.float32)
    o3 = jax.block_until_ready(swish_normal_forward(x3, beta, min_pallas_elems=0))
    r3 = swish_normal_reference(x3, beta)
    assert o3.shape == x3.shape and o3.dtype == x3.dtype
    assert jnp.allclose(o3, r3, atol=5e-3, rtol=5e-3)

    print("KERNEL_OK")
</pallas_src>

<mosaic_0001>
module attributes {stable_mosaic.version = 11 : i64} {
  func.func @_swish_normal_kernel(%arg0: i32, %arg1: memref<1xf32, #tpu.memory_space<smem>>, %arg2: memref<8x512xf32, #tpu.memory_space<vmem>>, %arg3: memref<8x512xf32, #tpu.memory_space<vmem>>) attributes {dimension_semantics = [#tpu.dimension_semantics<parallel>], iteration_bounds = array<i64: 1>, scalar_prefetch = 0 : i64, scratch_operands = 0 : i64, tpu.core_type = #tpu.core_type<tc>, window_params = [{transform_indices = @transform_0, window_bounds = array<i64: 1>}, {transform_indices = @transform_1, window_bounds = array<i64: 8, 512>}, {transform_indices = @transform_2, window_bounds = array<i64: 8, 512>}]} {
    %c0 = arith.constant 0 : index
    %0 = memref.load %arg1[%c0] : memref<1xf32, #tpu.memory_space<smem>>
    %c0_0 = arith.constant 0 : index
    %c0_1 = arith.constant 0 : index
    %1 = vector.load %arg2[%c0_0, %c0_1] : memref<8x512xf32, #tpu.memory_space<vmem>>, vector<8x512xf32>
    %2 = vector.broadcast %0 : f32 to vector<8x512xf32>
    %3 = arith.mulf %1, %2 : vector<8x512xf32>
    %cst = arith.constant 0.000000e+00 : f32
    %4 = vector.broadcast %cst : f32 to vector<8x512xf32>
    %5 = arith.subf %4, %3 : vector<8x512xf32>
    %6 = math.exp %5 : vector<8x512xf32>
    %cst_2 = arith.constant 1.000000e+00 : f32
    %7 = vector.broadcast %cst_2 : f32 to vector<8x512xf32>
    %8 = arith.addf %7, %6 : vector<8x512xf32>
    %cst_3 = arith.constant 1.100000e+00 : f32
    %9 = vector.broadcast %cst_3 : f32 to vector<8x512xf32>
    %10 = arith.mulf %9, %8 : vector<8x512xf32>
    %11 = tpu.reciprocal %10 {approx = true} : vector<8x512xf32> -> vector<8x512xf32>
    %12 = arith.mulf %1, %11 : vector<8x512xf32>
    %c0_4 = arith.constant 0 : index
    %c0_5 = arith.constant 0 : index
    %13 = vector.load %arg3[%c0_4, %c0_5] : memref<8x512xf32, #tpu.memory_space<vmem>>, vector<8x512xf32>
    tpu.vector_store %arg3[%c0_4, %c0_5], %12 {strides = array<i32>} : memref<8x512xf32, #tpu.memory_space<vmem>>, vector<8x512xf32>,
    return
  }
  func.func @transform_0(%arg0: i32) -> i32 {
    %c0_i32 = arith.constant 0 : i32
    %c0_i32_0 = arith.constant 0 : i32
    return %c0_i32 : i32
  }
  func.func @transform_1(%arg0: i32) -> (i32, i32) {
    %c0_i32 = arith.constant 0 : i32
    %c0_i32_0 = arith.constant 0 : i32
    return %arg0, %c0_i32 : i32, i32
  }
  func.func @transform_2(%arg0: i32) -> (i32, i32) {
    %c0_i32 = arith.constant 0 : i32
    %c0_i32_0 = arith.constant 0 : i32
    return %arg0, %c0_i32 : i32, i32
  }
}

</mosaic_0001>

<llo_original>
// kernel: tpu_custom_call.1
$region0: #{tpu_custom_call.1}
  #allocation0 [shape = 'u32[]', space=smem, size = 0x4, offset = 0x4, fixed_abs, tag = 'smem constant byte address 0x4 - core index']
  #allocation1 [shape = 'u32[144,128]{1,0:T(1,128)}', space=vmem, size = 0x12000, scoped, tag = 'internal scratch']
  #allocation2 [shape = 'f32[1]{0:T(128)S(6)}', space=smem, size = 0x200, scoped, tag = 'scoped memory for tpu_custom_call.1']
  %s0 = inlined_call_operand.<no memory space> [shape: f32[1], index: 0, kind: input, shape index: {}]
  %s1 = inlined_call_operand.hbm [shape: f32[4,512], index: 1, kind: input, shape index: {}]
  %s2 = inlined_call_operand.hbm [shape: f32[4,512], index: 2, kind: output, shape index: {}]
  %s3 = sld [smem:[#allocation0]]
  $region22: #{tpu_custom_call.1} parent=0
    _
  %s5 = ssub.s32 1, %s3
  %s6 = scalar_select 0, %s5, %s3
  %7 = sst [smem:[#allocation2]] %s0
  $region1: #{tpu_custom_call.1} parent=0
    #allocation3 [shape = 'u8[16384]{0}', space=vmem, size = 0x4000, scoped, tag = 'input window, operand 1, single buffered']
    #allocation4 [shape = 's32[1]{0}', space=sflag, size = 0x4, scoped, tag = 'scoped memory for tpu_custom_call.1']
    #allocation5 [shape = 's32[1]{0}', space=sflag, size = 0x4, scoped, tag = 'scoped memory for tpu_custom_call.1']
    #allocation6 [shape = 'u8[16384]{0}', space=vmem, size = 0x4000, scoped, tag = 'output window, operand 0, single buffered']
    %8 = vsyncpa [#allocation4], 0
    %9 = vsyncpa [#allocation5], 0
    // Predicated region
    $region2: #{tpu_custom_call.1} parent=1 // pred_check
      _
    $region3: #{tpu_custom_call.1} parent=1 // pred_check_branch
      %11 = sbr.rel (0) target = $region5
    $region4: #{tpu_custom_call.1} parent=1 // pred_region
      _
    $region5: #{tpu_custom_call.1} parent=1 // pred_fallthru
      _
    // Predicated region
    $region6: #{tpu_custom_call.1} parent=1 // pred_check
      _
    $region7: #{tpu_custom_call.1} parent=1 // pred_check_branch
      %13 = sbr.rel (0) target = $region9
    $region8: #{tpu_custom_call.1} parent=1 // pred_region
      %s15 = ssub.s32 512, 256
      %16 = vsyncadd [#allocation4], %s15
      %s17 = sshll.u32 [#allocation3], 4
      %s18 = int_to_ptr.vmem [resolvable:$true] %s17
      %23 = dma.hbm_to_vmem [thread:$0]  %s1, 256, %s18, [#allocation4], 256, 256, 16
    $region9: #{tpu_custom_call.1} parent=1 // pred_fallthru
      _
    // Predicated region
    $region10: #{tpu_custom_call.1} parent=1 // pred_check
      _
    $region11: #{tpu_custom_call.1} parent=1 // pred_check_branch
      %25 = sbr.rel (0) target = $region13
    $region12: #{tpu_custom_call.1} parent=1 // pred_region
      %26 = dma.done [#allocation4], 512
    $region13: #{tpu_custom_call.1} parent=1 // pred_fallthru
      _
    %s27 = sld [smem:[#allocation2]]
    %v28 = vld [vmem:[#allocation3] sm:$0xff]
    %v29 = vld [vmem:[#allocation3 + $0x8] sm:$0xff]
    %v30 = vld [vmem:[#allocation3 + $0x10] sm:$0xff]
    %v31 = vld [vmem:[#allocation3 + $0x18] sm:$0xff]
    %v32 = vstv %s27
    %v33 = vmul.f32 %v28, %v32
    %v34 = vmul.f32 %v29, %v32
    %v35 = vmul.f32 %v30, %v32
    %v36 = vmul.f32 %v31, %v32
    %v37 = vsub.f32 0.0, %v33
    %v38 = vsub.f32 0.0, %v34
    %v39 = vsub.f32 0.0, %v35
    %v40 = vsub.f32 0.0, %v36
    %v41 = vmul.f32 %v37, 1.442695
    %v42 = vpow.pop %v41
    %v43 = vmul.f32 %v38, 1.442695
    %v44 = vpow.pop %v43
    %v45 = vmul.f32 %v39, 1.442695
    %v46 = vpow.pop %v45
    %v47 = vmul.f32 %v40, 1.442695
    %v48 = vpow.pop %v47
    %v49 = vadd.f32 %v42, 1.0
    %v50 = vadd.f32 %v44, 1.0
    %v51 = vadd.f32 %v46, 1.0
    %v52 = vadd.f32 %v48, 1.0
    %v53 = vmul.f32 %v49, 1.1
    %v54 = vmul.f32 %v50, 1.1
    %v55 = vmul.f32 %v51, 1.1
    %v56 = vmul.f32 %v52, 1.1
    %v57 = vrcp.pop %v53
    %v58 = vrcp.pop %v54
    %v59 = vrcp.pop %v55
    %v60 = vrcp.pop %v56
    %v61 = vmul.f32 %v28, %v57
    %v62 = vmul.f32 %v29, %v58
    %v63 = vmul.f32 %v30, %v59
    %v64 = vmul.f32 %v31, %v60
    %65 = vst [vmem:[#allocation6] sm:$0xff] %v61
    %66 = vst [vmem:[#allocation6 + $0x8] sm:$0xff] %v62
    %67 = vst [vmem:[#allocation6 + $0x10] sm:$0xff] %v63
    %68 = vst [vmem:[#allocation6 + $0x18] sm:$0xff] %v64
    // Predicated region
    $region14: #{tpu_custom_call.1} parent=1 // pred_check
      _
    $region15: #{tpu_custom_call.1} parent=1 // pred_check_branch
      %70 = sbr.rel (0) target = $region17
    $region16: #{tpu_custom_call.1} parent=1 // pred_region
      %s72 = ssub.s32 512, 256
      %73 = vsyncadd [#allocation5], %s72
      %s74 = sshll.u32 [#allocation6], 4
      %s75 = int_to_ptr.vmem [resolvable:$true] %s74
      %80 = dma.vmem_to_hbm [thread:$0]  %s75, 256, %s2, [#allocation5], 256, 256, 16
    $region17: #{tpu_custom_call.1} parent=1 // pred_fallthru
      _
    // Predicated region
    $region18: #{tpu_custom_call.1} parent=1 // pred_check
      _
    $region19: #{tpu_custom_call.1} parent=1 // pred_check_branch
      %82 = sbr.rel (0) target = $region21
    $region20: #{tpu_custom_call.1} parent=1 // pred_region
      %83 = dma.done [#allocation5], 512
    $region21: #{tpu_custom_call.1} parent=1 // pred_fallthru
      _
    %84 = vsyncpa [#allocation4], 1
    %85 = vsyncpa [#allocation5], 1

</llo_original>
